<compile_context>
chip_gen: v7x
topology: tpu7x:2x2x1
jax: 0.10.0
libtpu: 0.0.40
codegen_flags: <defaults>
</compile_context>

<pallas_src>
import functools

import jax
import jax.numpy as jnp
from jax import lax
from jax.experimental import pallas as pl
from jax.experimental.pallas import tpu as pltpu

LANES = 128
SUBLANES = 8
GROUP = SUBLANES * LANES           # 1024 elements per (8, 128) vreg group
MAX_BLOCK_GROUPS = 1024            # (8192, 128) f32 block = 4 MiB per input per step
VMEM_LIMIT_BYTES = 48 * 1024 * 1024


def _rmse_kernel(tail_ref, x_ref, y_ref, o_ref, acc_ref, *,
                 groups_total, block_groups, need_mask, scale):
    k = pl.program_id(0)
    nk = pl.num_programs(0)
    last = nk - 1

    @pl.when(k == 0)
    def _():
        acc_ref[...] = jnp.zeros_like(acc_ref)

    d = x_ref[...].astype(jnp.float32) - y_ref[...].astype(jnp.float32)
    sq = d * d

    if need_mask:
        # Only the final (partial) block pays for the mask; interior blocks
        # are pure sub/mul/add on the VPU.
        @pl.when(k == last)
        def _():
            gid = lax.broadcasted_iota(jnp.int32, sq.shape, 0)
            valid = (k * block_groups + gid) < groups_total
            acc_ref[...] += jnp.sum(jnp.where(valid, sq, 0.0), axis=0)

        @pl.when(k != last)
        def _():
            acc_ref[...] += jnp.sum(sq, axis=0)
    else:
        acc_ref[...] += jnp.sum(sq, axis=0)

    @pl.when(k == last)
    def _():
        # Fused finalize: cross-lane reduce + ragged tail + mean scale + sqrt.
        total = jnp.sum(acc_ref[...], keepdims=True)          # (1, 1) f32
        total = (total + tail_ref[0]) * scale
        o_ref[...] = jnp.sqrt(total)


def rmse(inputs, target, reduction: str = "mean"):
    assert inputs.shape == target.shape, "inputs/target shape mismatch"
    assert reduction in ("mean", "sum"), "unsupported reduction"
    # TODO(synk): reduction='none' (elementwise) not implemented; torch default is 'mean'.

    n = inputs.size
    xf = inputs.reshape(-1)
    yf = target.reshape(-1)

    groups = n // GROUP
    n_main = groups * GROUP
    tail = n - n_main
    scale = (1.0 / n) if reduction == "mean" else 1.0

    if tail:
        # Ragged tail (< 1024 elements): tiny jnp sum-of-squares in the wrapper,
        # added in-kernel before the sqrt.  Avoids the old whole-array jnp.pad copy.
        xt = lax.slice(xf, (n_main,), (n,))
        yt = lax.slice(yf, (n_main,), (n,))
        dt = xt.astype(jnp.float32) - yt.astype(jnp.float32)
        tail_sum = jnp.sum(dt * dt).reshape(1)
    else:
        tail_sum = jnp.zeros((1,), jnp.float32)

    if groups == 0:
        # Tiny input (< 1024 elements): pure jnp path, no kernel launch.
        return jnp.sqrt(tail_sum[0] * jnp.float32(scale))

    if tail:
        # TODO(synk): prefix slice may still materialize a copy for ragged inputs;
        # a manual-DMA ragged kernel would avoid it entirely.
        x_main = lax.slice(xf, (0,), (n_main,))
        y_main = lax.slice(yf, (0,), (n_main,))
    else:
        x_main = xf
        y_main = yf

    x3 = x_main.reshape(groups, SUBLANES, LANES)
    y3 = y_main.reshape(groups, SUBLANES, LANES)

    block_groups = min(MAX_BLOCK_GROUPS, groups)
    num_blocks = pl.cdiv(groups, block_groups)
    need_mask = (groups % block_groups) != 0

    kernel = functools.partial(
        _rmse_kernel,
        groups_total=groups,
        block_groups=block_groups,
        need_mask=need_mask,
        scale=scale,
    )

    out = pl.pallas_call(
        kernel,
        out_shape=jax.ShapeDtypeStruct((1, 1), jnp.float32),
        grid=(num_blocks,),
        in_specs=[
            pl.BlockSpec(memory_space=pltpu.MemorySpace.SMEM),  # tail_sum scalar
            pl.BlockSpec((block_groups, SUBLANES, LANES), lambda k: (k, 0, 0)),
            pl.BlockSpec((block_groups, SUBLANES, LANES), lambda k: (k, 0, 0)),
        ],
        out_specs=pl.BlockSpec((1, 1), lambda k: (0, 0)),
        scratch_shapes=[pltpu.VMEM((SUBLANES, LANES), jnp.float32)],
        compiler_params=pltpu.CompilerParams(
            dimension_semantics=("arbitrary",),
            vmem_limit_bytes=VMEM_LIMIT_BYTES,
        ),
    )(tail_sum, x3, y3)

    return out[0, 0]


if __name__ == "__main__":
    key = jax.random.PRNGKey(0)
    k1, k2 = jax.random.split(key)
    # Small NCHW-like shapes, consistent with a typical image-loss use case.
    x = jax.random.normal(k1, (2, 4, 16, 16), dtype=jnp.float32)
    t = jax.random.normal(k2, (2, 4, 16, 16), dtype=jnp.float32)

    result = rmse(x, t, reduction="mean")
    jax.block_until_ready(result)
    ref = jnp.sqrt(jnp.mean((x - t) ** 2))
    assert jnp.allclose(result, ref, rtol=1e-4, atol=1e-6), (result, ref)

    # 'sum' reduction (sqrt of plain sum of squared errors, matching torch).
    r_sum = rmse(x, t, reduction="sum")
    ref_sum = jnp.sqrt(jnp.sum((x - t) ** 2))
    assert jnp.allclose(r_sum, ref_sum, rtol=1e-4, atol=1e-6), (r_sum, ref_sum)

    # bf16 pass-through (inputs stream in bf16, accumulation in f32 in-kernel).
    xb = x.astype(jnp.bfloat16)
    tb = t.astype(jnp.bfloat16)
    r_bf = rmse(xb, tb)
    ref_bf = jnp.sqrt(jnp.mean(
        (xb.astype(jnp.float32) - tb.astype(jnp.float32)) ** 2))
    assert jnp.allclose(r_bf, ref_bf, rtol=1e-3, atol=1e-6), (r_bf, ref_bf)

    # Non-tile-multiple shape (exercises the ragged-tail path, no pad copy).
    k3, k4 = jax.random.split(k2)
    x2 = jax.random.normal(k3, (2, 3, 15, 15), dtype=jnp.float32)
    t2 = jax.random.normal(k4, (2, 3, 15, 15), dtype=jnp.float32)
    r2 = rmse(x2, t2)
    ref2 = jnp.sqrt(jnp.mean((x2 - t2) ** 2))
    assert jnp.allclose(r2, ref2, rtol=1e-4, atol=1e-6), (r2, ref2)

    # Multi-block grid with a partial last block (exercises the guarded mask).
    k5, k6 = jax.random.split(k4)
    x3_ = jax.random.normal(k5, (1088, 1024), dtype=jnp.float32)
    t3_ = jax.random.normal(k6, (1088, 1024), dtype=jnp.float32)
    r3 = rmse(x3_, t3_)
    ref3 = jnp.sqrt(jnp.mean((x3_ - t3_) ** 2))
    assert jnp.allclose(r3, ref3, rtol=1e-4, atol=1e-6), (r3, ref3)

    print("KERNEL_OK")
</pallas_src>

<mosaic_0001>
module attributes {stable_mosaic.version = 11 : i64} {
  func.func @_rmse_kernel(%arg0: i32, %arg1: memref<1xf32, #tpu.memory_space<smem>>, %arg2: memref<2x8x128xf32, #tpu.memory_space<vmem>>, %arg3: memref<2x8x128xf32, #tpu.memory_space<vmem>>, %arg4: memref<1x1xf32, #tpu.memory_space<vmem>>, %arg5: memref<8x128xf32, #tpu.memory_space<vmem>>) attributes {dimension_semantics = [#tpu.dimension_semantics<arbitrary>], iteration_bounds = array<i64: 1>, scalar_prefetch = 0 : i64, scratch_operands = 1 : i64, tpu.core_type = #tpu.core_type<tc>, window_params = [{transform_indices = @transform_0, window_bounds = array<i64: 1>}, {transform_indices = @transform_1, window_bounds = array<i64: 2, 8, 128>}, {transform_indices = @transform_2, window_bounds = array<i64: 2, 8, 128>}, {pipeline_mode = #tpu.pipeline_mode<synchronous>, transform_indices = @transform_3, window_bounds = array<i64: 1, 1>}]} {
    %c0_i32 = arith.constant 0 : i32
    %0 = arith.cmpi eq, %arg0, %c0_i32 : i32
    %1 = arith.extui %0 : i1 to i32
    %c0_i32_0 = arith.constant 0 : i32
    %2 = arith.cmpi ne, %1, %c0_i32_0 : i32
    scf.if %2 {
      %cst_12 = arith.constant 0.000000e+00 : f32
      %14 = vector.broadcast %cst_12 : f32 to vector<8x128xf32>
      %c0_13 = arith.constant 0 : index
      %c0_14 = arith.constant 0 : index
      %15 = vector.load %arg5[%c0_13, %c0_14] : memref<8x128xf32, #tpu.memory_space<vmem>>, vector<8x128xf32>
      tpu.vector_store %arg5[%c0_13, %c0_14], %14 {strides = array<i32>} : memref<8x128xf32, #tpu.memory_space<vmem>>, vector<8x128xf32>,
    } else {
    }
    %c0 = arith.constant 0 : index
    %c0_1 = arith.constant 0 : index
    %c0_2 = arith.constant 0 : index
    %3 = vector.load %arg2[%c0, %c0_1, %c0_2] : memref<2x8x128xf32, #tpu.memory_space<vmem>>, vector<2x8x128xf32>
    %c0_3 = arith.constant 0 : index
    %c0_4 = arith.constant 0 : index
    %c0_5 = arith.constant 0 : index
    %4 = vector.load %arg3[%c0_3, %c0_4, %c0_5] : memref<2x8x128xf32, #tpu.memory_space<vmem>>, vector<2x8x128xf32>
    %5 = arith.subf %3, %4 : vector<2x8x128xf32>
    %6 = arith.mulf %5, %5 : vector<2x8x128xf32>
    %c0_6 = arith.constant 0 : index
    %c0_7 = arith.constant 0 : index
    %7 = vector.load %arg5[%c0_6, %c0_7] : memref<8x128xf32, #tpu.memory_space<vmem>>, vector<8x128xf32>
    %cst = arith.constant dense<0.000000e+00> : vector<8x128xf32>
    %8 = vector.multi_reduction <add>, %6, %cst [0] : vector<2x8x128xf32> to vector<8x128xf32>
    %9 = arith.addf %7, %8 : vector<8x128xf32>
    %c0_8 = arith.constant 0 : index
    %c0_9 = arith.constant 0 : index
    %10 = vector.load %arg5[%c0_8, %c0_9] : memref<8x128xf32, #tpu.memory_space<vmem>>, vector<8x128xf32>
    tpu.vector_store %arg5[%c0_8, %c0_9], %9 {strides = array<i32>} : memref<8x128xf32, #tpu.memory_space<vmem>>, vector<8x128xf32>,
    %c0_i32_10 = arith.constant 0 : i32
    %11 = arith.cmpi eq, %arg0, %c0_i32_10 : i32
    %12 = arith.extui %11 : i1 to i32
    %c0_i32_11 = arith.constant 0 : i32
    %13 = arith.cmpi ne, %12, %c0_i32_11 : i32
    scf.if %13 {
      %c0_12 = arith.constant 0 : index
      %c0_13 = arith.constant 0 : index
      %14 = vector.load %arg5[%c0_12, %c0_13] : memref<8x128xf32, #tpu.memory_space<vmem>>, vector<8x128xf32>
      %15 = vector.shape_cast %14 : vector<8x128xf32> to vector<1x8x128xf32>
      %cst_14 = arith.constant dense<0.000000e+00> : vector<1xf32>
      %16 = vector.multi_reduction <add>, %15, %cst_14 [1, 2] : vector<1x8x128xf32> to vector<1xf32>
      %17 = vector.shape_cast %16 : vector<1xf32> to vector<1x1x1xf32>
      %18 = vector.extract %17[0, 0, 0] : f32 from vector<1x1x1xf32>
      %19 = vector.broadcast %18 : f32 to vector<1x1xf32>
      %c0_15 = arith.constant 0 : index
      %20 = memref.load %arg1[%c0_15] : memref<1xf32, #tpu.memory_space<smem>>
      %21 = vector.broadcast %20 : f32 to vector<1x1xf32>
      %22 = arith.addf %19, %21 : vector<1x1xf32>
      %cst_16 = arith.constant 4.8828125E-4 : f32
      %23 = vector.broadcast %cst_16 : f32 to vector<1x1xf32>
      %24 = arith.mulf %22, %23 : vector<1x1xf32>
      %25 = math.sqrt %24 : vector<1x1xf32>
      %c0_17 = arith.constant 0 : index
      %c0_18 = arith.constant 0 : index
      %26 = vector.load %arg4[%c0_17, %c0_18] : memref<1x1xf32, #tpu.memory_space<vmem>>, vector<1x1xf32>
      tpu.vector_store %arg4[%c0_17, %c0_18], %25 {strides = array<i32>} : memref<1x1xf32, #tpu.memory_space<vmem>>, vector<1x1xf32>,
    } else {
    }
    return
  }
  func.func @transform_0(%arg0: i32) -> i32 {
    %c0_i32 = arith.constant 0 : i32
    %c0_i32_0 = arith.constant 0 : i32
    return %c0_i32 : i32
  }
  func.func @transform_1(%arg0: i32) -> (i32, i32, i32) {
    %c0_i32 = arith.constant 0 : i32
    %c0_i32_0 = arith.constant 0 : i32
    %c0_i32_1 = arith.constant 0 : i32
    return %arg0, %c0_i32, %c0_i32_0 : i32, i32, i32
  }
  func.func @transform_2(%arg0: i32) -> (i32, i32, i32) {
    %c0_i32 = arith.constant 0 : i32
    %c0_i32_0 = arith.constant 0 : i32
    %c0_i32_1 = arith.constant 0 : i32
    return %arg0, %c0_i32, %c0_i32_0 : i32, i32, i32
  }
  func.func @transform_3(%arg0: i32) -> (i32, i32) {
    %c0_i32 = arith.constant 0 : i32
    %c0_i32_0 = arith.constant 0 : i32
    %c0_i32_1 = arith.constant 0 : i32
    return %c0_i32, %c0_i32_0 : i32, i32
  }
}

</mosaic_0001>

<llo_original>
// kernel: tpu_custom_call.1
$region0: #{tpu_custom_call.1}
  #allocation0 [shape = 'u32[]', space=smem, size = 0x4, offset = 0x4, fixed_abs, tag = 'smem constant byte address 0x4 - core index']
  #allocation1 [shape = 'u32[144,128]{1,0:T(1,128)}', space=vmem, size = 0x12000, scoped, tag = 'internal scratch']
  #allocation2 [shape = 'f32[8,128]{1,0:T(8,128)}', space=vmem, size = 0x1000, scoped, tag = 'scratch operand']
  #allocation3 [shape = 'f32[1]{0:T(128)S(6)}', space=smem, size = 0x200, scoped, tag = 'scoped memory for tpu_custom_call.1']
  %s0 = inlined_call_operand.<no memory space> [shape: f32[1], index: 0, kind: input, shape index: {}]
  %s1 = inlined_call_operand.hbm [shape: f32[2,8,128], index: 1, kind: input, shape index: {}]
  %s2 = inlined_call_operand.hbm [shape: f32[2,8,128], index: 2, kind: input, shape index: {}]
  %s3 = inlined_call_operand.hbm [shape: f32[1,1], index: 3, kind: output, shape index: {}]
  %s4 = sld [smem:[#allocation0]]
  $region38: #{tpu_custom_call.1} parent=0
    _
  %s6 = ssub.s32 1, %s4
  %s7 = scalar_select 0, %s6, %s4
  %8 = sst [smem:[#allocation3]] %s0
  $region1: #{tpu_custom_call.1} parent=0
    #allocation4 [shape = 'u8[8192]{0}', space=vmem, size = 0x2000, scoped, tag = 'input window, operand 1, single buffered']
    #allocation5 [shape = 's32[1]{0}', space=sflag, size = 0x4, scoped, tag = 'scoped memory for tpu_custom_call.1']
    #allocation6 [shape = 's32[1]{0}', space=sflag, size = 0x4, scoped, tag = 'scoped memory for tpu_custom_call.1']
    #allocation7 [shape = 'u8[8192]{0}', space=vmem, size = 0x2000, scoped, tag = 'input window, operand 2, single buffered']
    #allocation8 [shape = 's32[1]{0}', space=sflag, size = 0x4, scoped, tag = 'scoped memory for tpu_custom_call.1']
    #allocation9 [shape = 'u8[512]{0}', space=vmem, size = 0x400, scoped, tag = 'output window, operand 0, single buffered']
    %9 = vsyncpa [#allocation5], 0
    %10 = vsyncpa [#allocation8], 0
    %11 = vsyncpa [#allocation6], 0
    // Predicated region
    $region2: #{tpu_custom_call.1} parent=1 // pred_check
      _
    $region3: #{tpu_custom_call.1} parent=1 // pred_check_branch
      %13 = sbr.rel (0) target = $region5
    $region4: #{tpu_custom_call.1} parent=1 // pred_region
      _
    $region5: #{tpu_custom_call.1} parent=1 // pred_fallthru
      _
    // Predicated region
    $region6: #{tpu_custom_call.1} parent=1 // pred_check
      _
    $region7: #{tpu_custom_call.1} parent=1 // pred_check_branch
      %15 = sbr.rel (0) target = $region9
    $region8: #{tpu_custom_call.1} parent=1 // pred_region
      %s17 = ssub.s32 256, 256
      %18 = vsyncadd [#allocation5], %s17
      %s19 = sshll.u32 [#allocation4], 4
      %s20 = int_to_ptr.vmem [resolvable:$true] %s19
      %25 = dma.hbm_to_vmem [thread:$0]  %s1, 256, %s20, [#allocation5], 128, 128, 8
    $region9: #{tpu_custom_call.1} parent=1 // pred_fallthru
      _
    // Predicated region
    $region10: #{tpu_custom_call.1} parent=1 // pred_check
      _
    $region11: #{tpu_custom_call.1} parent=1 // pred_check_branch
      %27 = sbr.rel (0) target = $region13
    $region12: #{tpu_custom_call.1} parent=1 // pred_region
      %s29 = ssub.s32 256, 256
      %30 = vsyncadd [#allocation8], %s29
      %s31 = sshll.u32 [#allocation7], 4
      %s32 = int_to_ptr.vmem [resolvable:$true] %s31
      %37 = dma.hbm_to_vmem [thread:$0]  %s2, 256, %s32, [#allocation8], 128, 128, 8
    $region13: #{tpu_custom_call.1} parent=1 // pred_fallthru
      _
    // Predicated region
    $region14: #{tpu_custom_call.1} parent=1 // pred_check
      _
    $region15: #{tpu_custom_call.1} parent=1 // pred_check_branch
      %39 = sbr.rel (0) target = $region17
    $region16: #{tpu_custom_call.1} parent=1 // pred_region
      %40 = dma.done [#allocation5], 256
    $region17: #{tpu_custom_call.1} parent=1 // pred_fallthru
      _
    // Predicated region
    $region18: #{tpu_custom_call.1} parent=1 // pred_check
      _
    $region19: #{tpu_custom_call.1} parent=1 // pred_check_branch
      %42 = sbr.rel (0) target = $region21
    $region20: #{tpu_custom_call.1} parent=1 // pred_region
      %43 = dma.done [#allocation8], 256
    $region21: #{tpu_custom_call.1} parent=1 // pred_fallthru
      _
    %p44 = scmp.eq.s32.totalorder 0, 0
    // Predicated region
    $region22: #{tpu_custom_call.1} parent=1 // pred_check
      %p45 = pneg %p44
    $region23: #{tpu_custom_call.1} parent=1 // pred_check_branch
      %47 = sbr.rel (%p45) target = $region25
    $region24: #{tpu_custom_call.1} parent=1 // pred_region
      %48 = vst [vmem:[#allocation2] sm:$0xff] 0.0
    $region25: #{tpu_custom_call.1} parent=1 // pred_fallthru
      _
    %v49 = vld [vmem:[#allocation4] sm:$0xff]
    %v50 = vld [vmem:[#allocation4 + $0x8] sm:$0xff]
    %v51 = vld [vmem:[#allocation7] sm:$0xff]
    %v52 = vld [vmem:[#allocation7 + $0x8] sm:$0xff]
    %v53 = vsub.f32 %v49, %v51
    %v54 = vsub.f32 %v50, %v52
    %v55 = vmul.f32 %v53, %v53
    %v56 = vmul.f32 %v54, %v54
    %v57 = vld [vmem:[#allocation2] sm:$0xff]
    %v58 = vadd.f32 %v55, %v56
    %v59 = vadd.f32 %v57, %v58
    %60 = vst [vmem:[#allocation2] sm:$0xff] %v59
    // Predicated region
    $region26: #{tpu_custom_call.1} parent=1 // pred_check
      %p61 = pneg %p44
    $region27: #{tpu_custom_call.1} parent=1 // pred_check_branch
      %63 = sbr.rel (%p61) target = $region29
    $region28: #{tpu_custom_call.1} parent=1 // pred_region
      %v64 = vld [vmem:[#allocation2] sm:$0xff]
      %65 = vadd.xlane.f32.xlu0 %v64
      %v66 = vpop.xlane.xlu0 %65
      %v67 = vrot.slane %v66, 4
      %v68 = vadd.f32 %v66, %v67
      %v69 = vrot.slane %v68, 2
      %v70 = vadd.f32 %v68, %v69
      %v71 = vrot.slane %v70, 1
      %v72 = vadd.f32 %v70, %v71
      %s73 = vtos %v72
      %v74 = vstv %s73
      %s75 = sld [smem:[#allocation3]]
      %v76 = vstv %s75
      %v77 = vadd.f32 %v74, %v76
      %v78 = vmul.f32 %v77, 0.00048828125
      %v79 = vrsqrt.pop %v78
      %v80 = vmul.f32 %v78, %v79
      %vm81 = vcmp.eq.f32.partialorder %v78, inf
      %v82 = vsel %vm81, %v78, %v80
      %vm83 = vcmp.eq.f32.partialorder %v78, 0.0
      %v84 = vand.u32 %v78, 2147483648
      %v85 = vsel %vm83, %v84, %v82
      %vm86 = vcmask 0
      %87 = vst.msk [vmem:[#allocation9] sm:$0x1] %vm86, %v85
    $region29: #{tpu_custom_call.1} parent=1 // pred_fallthru
      _
    // Predicated region
    $region30: #{tpu_custom_call.1} parent=1 // pred_check
      _
    $region31: #{tpu_custom_call.1} parent=1 // pred_check_branch
      %89 = sbr.rel (0) target = $region33
    $region32: #{tpu_custom_call.1} parent=1 // pred_region
      %s91 = ssub.s32 16, 16
      %92 = vsyncadd [#allocation6], %s91
      %s94 = sshll.u32 [#allocation9], 4
      %s95 = int_to_ptr.vmem [resolvable:$true] %s94
      %97 = dma.vmem_to_hbm [thread:$0]  %s95, 16, %s3, [#allocation6]
    $region33: #{tpu_custom_call.1} parent=1 // pred_fallthru
      _
    // Predicated region
    $region34: #{tpu_custom_call.1} parent=1 // pred_check
      _
    $region35: #{tpu_custom_call.1} parent=1 // pred_check_branch
      %99 = sbr.rel (0) target = $region37
    $region36: #{tpu_custom_call.1} parent=1 // pred_region
      %100 = dma.done [#allocation6], 16
    $region37: #{tpu_custom_call.1} parent=1 // pred_fallthru
      _
    %101 = vsyncpa [#allocation5], 1
    %102 = vsyncpa [#allocation8], 1
    %103 = vsyncpa [#allocation6], 1

</llo_original>
